<compile_context>
chip_gen: v5e
topology: v5e:2x2
jax: 0.10.0
libtpu: 0.0.40
codegen_flags: <defaults>
</compile_context>

<pallas_src>
import functools

import jax
import jax.numpy as jnp
from jax.experimental import pallas as pl
from jax.experimental.pallas import tpu as pltpu


def _round_up(x, m):
    return (x + m - 1) // m * m


def _pick_tile(total, unit, cap):
    """Largest divisor of `total` that is a multiple of `unit` and <= cap.

    `total` must already be a multiple of `unit` (falls back to `unit`)."""
    q = total // unit
    best = 1
    d = 1
    while d * d <= q:
        if q % d == 0:
            for c in (d, q // d):
                if c * unit <= cap and c > best:
                    best = c
        d += 1
    return best * unit


def _gemm_bias_kernel(p_ref, w_ref, b_ref, o_ref):
    """Single-K-step GEMM tile: o = p @ w + bias (no accumulator needed)."""
    o_ref[...] = (
        jnp.dot(p_ref[...], w_ref[...], preferred_element_type=jnp.float32)
        + b_ref[...])


def _gemm_bias_acc_kernel(p_ref, w_ref, b_ref, o_ref):
    """Multi-K-step GEMM tile: accumulate straight into the resident f32
    output block (output index_map ignores the K axis, so it stays in VMEM
    across K steps).  Bias is added exactly once, on the first K step."""
    kk = pl.program_id(2)
    prod = jnp.dot(p_ref[...], w_ref[...], preferred_element_type=jnp.float32)

    @pl.when(kk == 0)
    def _():
        o_ref[...] = prod + b_ref[...]

    @pl.when(kk != 0)
    def _():
        o_ref[...] = o_ref[...] + prod


@functools.partial(jax.jit, static_argnames=("stride", "padding"))
def my_conv2d(x, weight, bias, *, stride=2, padding=1):
    """Exact forward semantics of MyConv2d.forward (NCHW in, NCHW out)."""
    B, C, H, W = x.shape
    OC, _, k, _ = weight.shape
    out_H = (H + 2 * padding - k) // stride + 1
    out_W = (W + 2 * padding - k) // stride + 1

    # --- glue: NHWC + strided taps so reshape to (M, K) is layout-free -----
    # TODO(synk): fuse patch extraction into the Pallas kernel (k*k shifted
    # matmuls over a padded NHWC x kept in HBM) to remove this round trip.
    x_nhwc = jnp.transpose(x, (0, 2, 3, 1)).astype(jnp.bfloat16)  # (B,H,W,C)
    if padding > 0:
        x_p = jnp.pad(x_nhwc, ((0, 0), (padding, padding),
                               (padding, padding), (0, 0)))
    else:
        x_p = x_nhwc

    taps = []
    for di in range(k):
        for dj in range(k):
            taps.append(x_p[:, di:di + stride * out_H:stride,
                            dj:dj + stride * out_W:stride, :])  # (B,oH,oW,C)
    patches = jnp.stack(taps, axis=3)          # (B, oH, oW, k*k, C)

    M = B * out_H * out_W
    K = k * k * C
    patches = patches.reshape(M, K)            # C innermost -> layout-free

    # weight (OC, C, k, k) -> (k, k, C, OC) to match the (ki, kj, C) K order.
    w_mat = jnp.transpose(weight, (2, 3, 1, 0)).reshape(K, OC)
    w_mat = w_mat.astype(jnp.bfloat16)
    b_mat = bias.reshape(1, OC).astype(jnp.float32)

    # --- tile selection -----------------------------------------------------
    OCp = _round_up(OC, 128)
    tn = OCp if OCp <= 512 else _pick_tile(OCp, 128, 512)   # lane-dense N

    Kp = _round_up(K, 128)                # pad K only to 128, not to tk
    tk = _pick_tile(Kp, 128, 1024)        # tk divides Kp -> no over-padding

    Mp = _round_up(M, 8)                  # pad M only to 8, not to tm
    tm_cap = 1024
    if OCp == tn and Mp >= 16:
        # v7x megacore: if the N axis collapsed to one step, keep >= 2
        # parallel steps on the M axis so both TensorCores get work.
        tm_cap = min(tm_cap, Mp // 2)
    tm = _pick_tile(Mp, 8, max(8, tm_cap))

    patches = jnp.pad(patches, ((0, Mp - M), (0, Kp - K)))
    w_mat = jnp.pad(w_mat, ((0, Kp - K), (0, OCp - OC)))
    b_mat = jnp.pad(b_mat, ((0, 0), (0, OCp - OC)))

    num_k = Kp // tk
    if num_k == 1:
        # Single K step: no K grid axis, no accumulation gating.
        grid = (Mp // tm, OCp // tn)
        in_specs = [
            pl.BlockSpec((tm, Kp), lambda i, j: (i, 0)),      # patches
            pl.BlockSpec((Kp, tn), lambda i, j: (0, j)),      # weights
            pl.BlockSpec((1, tn), lambda i, j: (0, j)),       # bias
        ]
        out_spec = pl.BlockSpec((tm, tn), lambda i, j: (i, j))
        kernel = _gemm_bias_kernel
        dims = ("parallel", "parallel")
    else:
        # K-reduction on the LAST grid axis; output block resident across kk.
        grid = (Mp // tm, OCp // tn, num_k)
        in_specs = [
            pl.BlockSpec((tm, tk), lambda i, j, kk: (i, kk)),  # patches
            pl.BlockSpec((tk, tn), lambda i, j, kk: (kk, j)),  # weights
            pl.BlockSpec((1, tn), lambda i, j, kk: (0, j)),    # bias
        ]
        out_spec = pl.BlockSpec((tm, tn), lambda i, j, kk: (i, j))
        kernel = _gemm_bias_acc_kernel
        dims = ("parallel", "parallel", "arbitrary")

    cost = pl.CostEstimate(
        flops=2 * Mp * Kp * OCp,
        transcendentals=0,
        bytes_accessed=Mp * Kp * 2 + Kp * OCp * 2 + OCp * 4 + Mp * OCp * 4)

    out_flat = pl.pallas_call(
        kernel,
        out_shape=jax.ShapeDtypeStruct((Mp, OCp), jnp.float32),
        grid_spec=pltpu.PrefetchScalarGridSpec(
            num_scalar_prefetch=0,
            grid=grid,
            in_specs=in_specs,
            out_specs=out_spec,
        ),
        compiler_params=pltpu.CompilerParams(
            dimension_semantics=dims,
            vmem_limit_bytes=32 * 1024 * 1024),
        cost_estimate=cost,
    )(patches, w_mat, b_mat)

    # (Mp, OCp) -> (M, OC) -> (B, oH, oW, OC) -> (B, OC, oH, oW)
    # TODO(synk): if the consumer accepts channels-last, return (B,oH,oW,OC)
    # directly and skip this full-output transpose.
    out = out_flat[:M, :OC].reshape(B, out_H, out_W, OC)
    return jnp.transpose(out, (0, 3, 1, 2))


def _ref_conv(x, w, b, stride, padding):
    """Reference with the same bf16 operand rounding as the kernel."""
    x_r = x.astype(jnp.bfloat16).astype(jnp.float32)
    w_r = w.astype(jnp.bfloat16).astype(jnp.float32)
    y = jax.lax.conv_general_dilated(
        x_r, w_r, window_strides=(stride, stride),
        padding=((padding, padding), (padding, padding)),
        dimension_numbers=("NCHW", "OIHW", "NCHW"))
    return y + b.reshape(1, -1, 1, 1)


if __name__ == "__main__":
    key = jax.random.PRNGKey(0)
    k_x, k_w = jax.random.split(key)

    # Small shapes consistent with the module: batch=2, in_ch=4, 16x16, out_ch=8, k=3.
    B, C, H, W = 2, 4, 16, 16
    OC, ksize, stride, padding = 8, 3, 2, 1

    x = jax.random.normal(k_x, (B, C, H, W), dtype=jnp.float32)
    weight = jax.random.normal(k_w, (OC, C, ksize, ksize), dtype=jnp.float32) * 0.01
    bias = jnp.zeros((OC,), dtype=jnp.float32)

    out = my_conv2d(x, weight, bias, stride=stride, padding=padding)
    out = jax.block_until_ready(out)

    out_H = (H + 2 * padding - ksize) // stride + 1
    out_W = (W + 2 * padding - ksize) // stride + 1
    assert out.shape == (B, OC, out_H, out_W)
    ref = _ref_conv(x, weight, bias, stride, padding)
    assert jnp.allclose(out, ref, atol=1e-3, rtol=1e-2), \
        float(jnp.max(jnp.abs(out - ref)))

    # Second tiny check that exercises the multi-K-step accumulate path
    # (K = 48*5*5 = 1200 -> Kp = 1280, tk = 640, two K grid steps).
    C2, k2, p2 = 48, 5, 2
    x2 = jax.random.normal(k_x, (B, C2, H, W), dtype=jnp.float32)
    w2 = jax.random.normal(k_w, (OC, C2, k2, k2), dtype=jnp.float32) * 0.01
    out2 = my_conv2d(x2, w2, bias, stride=stride, padding=p2)
    out2 = jax.block_until_ready(out2)
    ref2 = _ref_conv(x2, w2, bias, stride, p2)
    assert out2.shape == ref2.shape
    assert jnp.allclose(out2, ref2, atol=1e-3, rtol=1e-2), \
        float(jnp.max(jnp.abs(out2 - ref2)))

    print("KERNEL_OK")
</pallas_src>

<mosaic_0001>
module attributes {stable_mosaic.version = 11 : i64} {
  func.func @_gemm_bias_kernel(%arg0: i32, %arg1: i32, %arg2: memref<64x128xbf16, #tpu.memory_space<vmem>>, %arg3: memref<128x128xbf16, #tpu.memory_space<vmem>>, %arg4: memref<1x128xf32, #tpu.memory_space<vmem>>, %arg5: memref<64x128xf32, #tpu.memory_space<vmem>>) attributes {dimension_semantics = [#tpu.dimension_semantics<parallel>, #tpu.dimension_semantics<parallel>], iteration_bounds = array<i64: 2, 1>, scalar_prefetch = 0 : i64, scratch_operands = 0 : i64, tpu.core_type = #tpu.core_type<tc>, window_params = [{transform_indices = @transform_0, window_bounds = array<i64: 64, 128>}, {transform_indices = @transform_1, window_bounds = array<i64: 128, 128>}, {transform_indices = @transform_2, window_bounds = array<i64: 1, 128>}, {transform_indices = @transform_3, window_bounds = array<i64: 64, 128>}]} {
    %c0 = arith.constant 0 : index
    %c0_0 = arith.constant 0 : index
    %0 = vector.load %arg2[%c0, %c0_0] : memref<64x128xbf16, #tpu.memory_space<vmem>>, vector<64x128xbf16>
    %c0_1 = arith.constant 0 : index
    %c0_2 = arith.constant 0 : index
    %1 = vector.load %arg3[%c0_1, %c0_2] : memref<128x128xbf16, #tpu.memory_space<vmem>>, vector<128x128xbf16>
    %cst = arith.constant dense<0.000000e+00> : vector<64x128xf32>
    %2 = tpu.matmul %0, %1, %cst {dimension_numbers = #tpu.dot_dimension_numbers<[1], [0], [0], [1], [0, 0, 1, 1], [], []>} : vector<64x128xbf16>, vector<128x128xbf16>, vector<64x128xf32> -> vector<64x128xf32>
    %c0_3 = arith.constant 0 : index
    %c0_4 = arith.constant 0 : index
    %3 = vector.load %arg4[%c0_3, %c0_4] : memref<1x128xf32, #tpu.memory_space<vmem>>, vector<1x128xf32>
    %4 = vector.broadcast %3 : vector<1x128xf32> to vector<64x128xf32>
    %5 = arith.addf %2, %4 : vector<64x128xf32>
    %c0_5 = arith.constant 0 : index
    %c0_6 = arith.constant 0 : index
    %6 = vector.load %arg5[%c0_5, %c0_6] : memref<64x128xf32, #tpu.memory_space<vmem>>, vector<64x128xf32>
    tpu.vector_store %arg5[%c0_5, %c0_6], %5 {strides = array<i32>} : memref<64x128xf32, #tpu.memory_space<vmem>>, vector<64x128xf32>,
    return
  }
  func.func @transform_0(%arg0: i32, %arg1: i32) -> (i32, i32) {
    %c0_i32 = arith.constant 0 : i32
    %c0_i32_0 = arith.constant 0 : i32
    return %arg0, %c0_i32 : i32, i32
  }
  func.func @transform_1(%arg0: i32, %arg1: i32) -> (i32, i32) {
    %c0_i32 = arith.constant 0 : i32
    %c0_i32_0 = arith.constant 0 : i32
    return %c0_i32, %arg1 : i32, i32
  }
  func.func @transform_2(%arg0: i32, %arg1: i32) -> (i32, i32) {
    %c0_i32 = arith.constant 0 : i32
    %c0_i32_0 = arith.constant 0 : i32
    return %c0_i32, %arg1 : i32, i32
  }
  func.func @transform_3(%arg0: i32, %arg1: i32) -> (i32, i32) {
    %c0_i32 = arith.constant 0 : i32
    return %arg0, %arg1 : i32, i32
  }
}

</mosaic_0001>

<llo_original>
// kernel: my_conv2d.1
$region0: #{my_conv2d.1}
  #allocation0 [shape = 'u32[]', space=smem, size = 0x4, offset = 0x4, fixed_abs, tag = 'smem constant byte address 0x4 - core index']
  #allocation1 [shape = 'u32[72,128]{1,0:T(1,128)}', space=vmem, size = 0x9000, scoped, tag = 'internal scratch']
  %s0 = inlined_call_operand.vmem [shape: bf16[128,128], index: 0, kind: input, shape index: {}]
  %s1 = inlined_call_operand.vmem [shape: bf16[128,128], index: 1, kind: input, shape index: {}]
  %s2 = inlined_call_operand.vmem [shape: f32[1,128], index: 2, kind: input, shape index: {}]
  %s3 = inlined_call_operand.vmem [shape: f32[128,128], index: 3, kind: output, shape index: {}]
  %s4 = sld [smem:[#allocation0]]
  $region45: #{my_conv2d.1} parent=0
    _
  %s6 = ssub.s32 1, %s4
  %s7 = scalar_select 0, %s6, %s4
  loop: start=0, step=1, limit=4
  $region2: #{my_conv2d.1} parent=0 // loop_pre_header
    _
  $region3: #{my_conv2d.1} parent=0 // loop_header
    %s9 = sphi 0, %s13
    %p10 = scmp.ge.s32.totalorder %s9, 4
    %s16 = sphi 0, %s28
    %s17 = sphi 0, %s24
    %s18 = sphi 0, %s16
    %s19 = sphi 0, %s17
    %s20 = sphi 0, %s18
    %s21 = sphi 0, %s19
    %s31 = sphi 0, %s33
    %s34 = sphi 0, %s31
    %s35 = sphi 0, %s34
    %s51 = sphi 0, %s35
    %s57 = sphi 0, %s59
    %s60 = sphi 0, %s57
    %s61 = sphi 0, %s60
    %s77 = sphi 0, %s61
    %s83 = sphi 0, %s85
    %s86 = sphi 0, %s83
    %s87 = sphi 0, %s86
    %s103 = sphi 0, %s87
    %s111 = sphi 0, %s113
    %s114 = sphi 0, %s111
    %s115 = sphi 0, %s114
    %s131 = sphi 0, %s115
  $region4: #{my_conv2d.1} parent=0 // loop_header_branch
    %12 = sbr.rel (%p10) target = $region8
  $region5: #{my_conv2d.1} parent=0 // loop_body
    %s14 = ssub.s32 %s9, 1
    %s15 = ssub.s32 %s9, 2
    %s22 = sadd.s32 1, %s17
    %p23 = scmp.ge.s32.totalorder %s22, 1
    %s24 = scalar_select %p23, 0, %s22
    %s25 = sadd.s32 1, %s16
    %s26 = scalar_select %p23, %s25, %s16
    %p27 = scmp.ge.s32.totalorder %s26, 2
    %s28 = scalar_select %p27, 0, %s26
    %s29 = ssub.s32 %s16, %s28
    %p30 = scmp.eq.s32.totalorder %s29, 0
    %s32 = sadd.s32 %s31, 1
    %s33 = scalar_select %p30, %s31, %s32
    %p36 = pneg %p30
    %p37 = scmp.eq.s32.totalorder %s9, 1
    %p38 = por %p36, %p37
    %p39 = scmp.ne.s32.totalorder %s31, %s34
    %p40 = scmp.eq.s32.totalorder %s9, 0
    %p41 = por %p39, %p40
    %p42 = scmp.ne.s32.totalorder %s31, %s34
    %p43 = scmp.eq.s32.totalorder %s14, 1
    %p44 = por %p42, %p43
    %p45 = scmp.ne.s32.totalorder %s34, %s35
    %p46 = scmp.eq.s32.totalorder %s14, 0
    %p47 = por %p45, %p46
    %p48 = scmp.ne.s32.totalorder %s34, %s35
    %p49 = scmp.eq.s32.totalorder %s15, 1
    %p50 = por %p48, %p49
    %p52 = scmp.ne.s32.totalorder %s35, %s51
    %p53 = scmp.eq.s32.totalorder %s15, 0
    %p54 = por %p52, %p53
    %s55 = ssub.s32 %s17, %s24
    %p56 = scmp.eq.s32.totalorder %s55, 0
    %s58 = sadd.s32 %s57, 1
    %s59 = scalar_select %p56, %s57, %s58
    %p62 = pneg %p56
    %p63 = scmp.eq.s32.totalorder %s9, 1
    %p64 = por %p62, %p63
    %p65 = scmp.ne.s32.totalorder %s57, %s60
    %p66 = scmp.eq.s32.totalorder %s9, 0
    %p67 = por %p65, %p66
    %p68 = scmp.ne.s32.totalorder %s57, %s60
    %p69 = scmp.eq.s32.totalorder %s14, 1
    %p70 = por %p68, %p69
    %p71 = scmp.ne.s32.totalorder %s60, %s61
    %p72 = scmp.eq.s32.totalorder %s14, 0
    %p73 = por %p71, %p72
    %p74 = scmp.ne.s32.totalorder %s60, %s61
    %p75 = scmp.eq.s32.totalorder %s15, 1
    %p76 = por %p74, %p75
    %p78 = scmp.ne.s32.totalorder %s61, %s77
    %p79 = scmp.eq.s32.totalorder %s15, 0
    %p80 = por %p78, %p79
    %s81 = ssub.s32 %s17, %s24
    %p82 = scmp.eq.s32.totalorder %s81, 0
    %s84 = sadd.s32 %s83, 1
    %s85 = scalar_select %p82, %s83, %s84
    %p88 = pneg %p82
    %p89 = scmp.eq.s32.totalorder %s9, 1
    %p90 = por %p88, %p89
    %p91 = scmp.ne.s32.totalorder %s83, %s86
    %p92 = scmp.eq.s32.totalorder %s9, 0
    %p93 = por %p91, %p92
    %p94 = scmp.ne.s32.totalorder %s83, %s86
    %p95 = scmp.eq.s32.totalorder %s14, 1
    %p96 = por %p94, %p95
    %p97 = scmp.ne.s32.totalorder %s86, %s87
    %p98 = scmp.eq.s32.totalorder %s14, 0
    %p99 = por %p97, %p98
    %p100 = scmp.ne.s32.totalorder %s86, %s87
    %p101 = scmp.eq.s32.totalorder %s15, 1
    %p102 = por %p100, %p101
    %p104 = scmp.ne.s32.totalorder %s87, %s103
    %p105 = scmp.eq.s32.totalorder %s15, 0
    %p106 = por %p104, %p105
    %s107 = ssub.s32 %s16, %s28
    %s108 = ssub.s32 %s17, %s24
    %s109 = sor.u32 %s107, %s108
    %p110 = scmp.eq.s32.totalorder %s109, 0
    %s112 = sadd.s32 %s111, 1
    %s113 = scalar_select %p110, %s111, %s112
    %p116 = pneg %p110
    %p117 = scmp.eq.s32.totalorder %s9, 1
    %p118 = por %p116, %p117
    %p119 = scmp.ne.s32.totalorder %s111, %s114
    %p120 = scmp.eq.s32.totalorder %s9, 0
    %p121 = por %p119, %p120
    %p122 = scmp.ne.s32.totalorder %s111, %s114
    %p123 = scmp.eq.s32.totalorder %s14, 1
    %p124 = por %p122, %p123
    %p125 = scmp.ne.s32.totalorder %s114, %s115
    %p126 = scmp.eq.s32.totalorder %s14, 0
    %p127 = por %p125, %p126
    %p128 = scmp.ne.s32.totalorder %s114, %s115
    %p129 = scmp.eq.s32.totalorder %s15, 1
    %p130 = por %p128, %p129
    %p132 = scmp.ne.s32.totalorder %s115, %s131
    %p133 = scmp.eq.s32.totalorder %s15, 0
    %p134 = por %p132, %p133
    %p135 = scmp.le.s32.totalorder 1, %s9
    %p136 = scmp.lt.s32.totalorder %s9, 3
    %p137 = pnand %p135, %p136
    %p138 = pneg %p137
    // Predicated region
    $region9: #{my_conv2d.1} parent=5 // pred_check
      _
    $region10: #{my_conv2d.1} parent=5 // pred_check_branch
      %140 = sbr.rel (%p137) target = $region12
    $region11: #{my_conv2d.1} parent=5 // pred_region
      %s141 = ssub.s32 %s9, 1
      // Predicated region
      $region13: #{my_conv2d.1} parent=11 // pred_check
        %p142 = pneg %p73
      $region14: #{my_conv2d.1} parent=11 // pred_check_branch
        %144 = sbr.rel (%p142) target = $region16
      $region15: #{my_conv2d.1} parent=11 // pred_region
        %p145 = scmp.lt.s32.totalorder %s19, 0
        %s146 = scalar_select %p145, %s19, 0
        %s147 = smul.addr %s146, 4
        %s148 = scalar_lea.vmem %s1, %s147
      $region16: #{my_conv2d.1} parent=11 // pred_fallthru
        _
      // Predicated region
      $region17: #{my_conv2d.1} parent=11 // pred_check
        %p149 = pneg %p99
      $region18: #{my_conv2d.1} parent=11 // pred_check_branch
        %151 = sbr.rel (%p149) target = $region20
      $region19: #{my_conv2d.1} parent=11 // pred_region
        %p152 = scmp.lt.s32.totalorder %s19, 0
        %s153 = scalar_select %p152, %s19, 0
        %s154 = scalar_lea.vmem %s2, %s153
      $region20: #{my_conv2d.1} parent=11 // pred_fallthru
        _
    $region12: #{my_conv2d.1} parent=5 // pred_fallthru
      _
    %p155 = scmp.lt.s32.totalorder %s9, 2
    // Predicated region
    $region21: #{my_conv2d.1} parent=5 // pred_check
      %p156 = pneg %p155
    $region22: #{my_conv2d.1} parent=5 // pred_check_branch
      %158 = sbr.rel (%p156) target = $region24
    $region23: #{my_conv2d.1} parent=5 // pred_region
      // Predicated region
      $region25: #{my_conv2d.1} parent=23 // pred_check
        %p159 = pneg %p41
      $region26: #{my_conv2d.1} parent=23 // pred_check_branch
        %161 = sbr.rel (%p159) target = $region28
      $region27: #{my_conv2d.1} parent=23 // pred_region
        %s162 = smul.u32 8, %s16
        %p163 = scmp.lt.s32.totalorder %s162, 15
        %s164 = scalar_select %p163, %s162, 15
        %s165 = smul.addr %s164, 4
        %s166 = scalar_lea.vmem %s0, %s165
        %s167 = smul.u32 8, %s16
      $region28: #{my_conv2d.1} parent=23 // pred_fallthru
        _
    $region24: #{my_conv2d.1} parent=5 // pred_fallthru
      _
    %p168 = scmp.le.s32.totalorder 1, %s9
    %p169 = scmp.lt.s32.totalorder %s9, 3
    %p170 = pnand %p168, %p169
    %p171 = pneg %p170
    // Predicated region
    $region29: #{my_conv2d.1} parent=5 // pred_check
      _
    $region30: #{my_conv2d.1} parent=5 // pred_check_branch
      %173 = sbr.rel (%p170) target = $region32
    $region31: #{my_conv2d.1} parent=5 // pred_region
      %s174 = ssub.s32 %s9, 1
      %s175 = smul.u32 8, %s18
      %p176 = scmp.lt.s32.totalorder %s175, 15
      %s177 = scalar_select %p176, %s175, 15
      %s178 = smul.addr %s177, 4
      %s179 = scalar_lea.vmem %s0, %s178
      %p180 = pneg %p47
      %p181 = pneg %p44
      %p182 = scmp.lt.s32.totalorder %s19, 0
      %s183 = scalar_select %p182, %s19, 0
      %s184 = smul.addr %s183, 4
      %s185 = scalar_lea.vmem %s1, %s184
      %p186 = pneg %p73
      %p187 = pneg %p70
      %p188 = scmp.lt.s32.totalorder %s19, 0
      %s189 = scalar_select %p188, %s19, 0
      %s190 = scalar_lea.vmem %s2, %s189
      %p191 = pneg %p99
      %p192 = pneg %p96
      %p193 = pneg %p127
      %p194 = pneg %p124
      %s195 = smul.u32 8, %s18
      %p196 = scmp.lt.s32.totalorder %s195, 15
      %s197 = scalar_select %p196, %s195, 15
      %p198 = scmp.lt.s32.totalorder %s19, 0
      %s199 = scalar_select %p198, %s19, 0
      %s200 = sadd.s32 %s199, %s197
      %s201 = smul.addr %s200, 8
      %s202 = scalar_lea.vmem %s3, %s201
      %s203 = smul.u32 8, %s18
      %p204 = scmp.lt.s32.totalorder %s203, 15
      %s205 = scalar_select %p204, %s203, 15
      %s206 = smul.addr %s205, 4
      %s207 = scalar_lea.vmem %s0, %s206
      %s208 = smul.u32 8, %s18
      %p209 = scmp.lt.s32.totalorder %s19, 0
      %s210 = scalar_select %p209, %s19, 0
      %s211 = smul.addr %s210, 4
      %s212 = scalar_lea.vmem %s1, %s211
      %p213 = scmp.lt.s32.totalorder %s19, 0
      %s214 = scalar_select %p213, %s19, 0
      %s215 = scalar_lea.vmem %s2, %s214
      %s216 = smul.u32 8, %s18
      %p217 = scmp.lt.s32.totalorder %s216, 15
      %s218 = scalar_select %p217, %s216, 15
      %p219 = scmp.lt.s32.totalorder %s19, 0
      %s220 = scalar_select %p219, %s19, 0
      %s221 = sadd.s32 %s220, %s218
      %s222 = smul.addr %s221, 8
      %s223 = scalar_lea.vmem %s3, %s222
      %s224 = smul.u32 8, %s18
      %v225 = vld [vmem:[%s207] sm:$0xf]
      %v226 = vld [vmem:[%s207 + $0x4] sm:$0xf]
      %v227 = vld [vmem:[%s207 + $0x8] sm:$0xf]
      %v228 = vld [vmem:[%s207 + $0xc] sm:$0xf]
      %v229 = vld [vmem:[%s207 + $0x10] sm:$0xf]
      %v230 = vld [vmem:[%s207 + $0x14] sm:$0xf]
      %v231 = vld [vmem:[%s207 + $0x18] sm:$0xf]
      %v232 = vld [vmem:[%s207 + $0x1c] sm:$0xf]
      %v233 = vld [vmem:[%s212] sm:$0xf]
      %v234 = vld [vmem:[%s212 + $0x4] sm:$0xf]
      %v235 = vld [vmem:[%s212 + $0x8] sm:$0xf]
      %v236 = vld [vmem:[%s212 + $0xc] sm:$0xf]
      %v237 = vld [vmem:[%s212 + $0x10] sm:$0xf]
      %v238 = vld [vmem:[%s212 + $0x14] sm:$0xf]
      %v239 = vld [vmem:[%s212 + $0x18] sm:$0xf]
      %v240 = vld [vmem:[%s212 + $0x1c] sm:$0xf]
      %v241 = vld [vmem:[%s212 + $0x20] sm:$0xf]
      %v242 = vld [vmem:[%s212 + $0x24] sm:$0xf]
      %v243 = vld [vmem:[%s212 + $0x28] sm:$0xf]
      %v244 = vld [vmem:[%s212 + $0x2c] sm:$0xf]
      %v245 = vld [vmem:[%s212 + $0x30] sm:$0xf]
      %v246 = vld [vmem:[%s212 + $0x34] sm:$0xf]
      %v247 = vld [vmem:[%s212 + $0x38] sm:$0xf]
      %v248 = vld [vmem:[%s212 + $0x3c] sm:$0xf]
      %v249 = vld [vmem:[%s215] sm:$0x1]
      %v251 = vperm.slane %v249, 0
      %v261 = vunpack.c.l.b16 %v225
      %v262 = vunpack.c.l.b16 %v226
      %v263 = vunpack.c.l.b16 %v227
      %v264 = vunpack.c.l.b16 %v228
      %v265 = vunpack.c.l.b16 %v229
      %v266 = vunpack.c.l.b16 %v230
      %v267 = vunpack.c.l.b16 %v231
      %v268 = vunpack.c.l.b16 %v232
      %v269 = vpack.c.b16 %v262, %v261
      %v270 = vpack.c.b16 %v264, %v263
      %v271 = vpack.c.b16 %v266, %v265
      %v272 = vpack.c.b16 %v268, %v267
      %v293 = vunpack.c.l.b16 %v233
      %v294 = vunpack.c.l.b16 %v234
      %v295 = vunpack.c.l.b16 %v235
      %v296 = vunpack.c.l.b16 %v236
      %v297 = vunpack.c.l.b16 %v237
      %v298 = vunpack.c.l.b16 %v238
      %v299 = vunpack.c.l.b16 %v239
      %v300 = vunpack.c.l.b16 %v240
      %v301 = vunpack.c.l.b16 %v241
      %v302 = vunpack.c.l.b16 %v242
      %v303 = vunpack.c.l.b16 %v243
      %v304 = vunpack.c.l.b16 %v244
      %v305 = vunpack.c.l.b16 %v245
      %v306 = vunpack.c.l.b16 %v246
      %v307 = vunpack.c.l.b16 %v247
      %v308 = vunpack.c.l.b16 %v248
      %v309 = vpack.c.b16 %v294, %v293
      %v310 = vpack.c.b16 %v296, %v295
      %v311 = vpack.c.b16 %v298, %v297
      %v312 = vpack.c.b16 %v300, %v299
      %v313 = vpack.c.b16 %v302, %v301
      %v314 = vpack.c.b16 %v304, %v303
      %v315 = vpack.c.b16 %v306, %v305
      %v316 = vpack.c.b16 %v308, %v307
      %325 = vmatpush.bf16.msra.mxu0 %v316
      %326 = vmatpush.bf16.msra.mxu0 %v315
      %327 = vmatpush.bf16.msra.mxu0 %v314
      %328 = vmatpush.bf16.msra.mxu0 %v313
      %329 = vmatpush.bf16.msra.mxu0 %v312
      %330 = vmatpush.bf16.msra.mxu0 %v311
      %331 = vmatpush.bf16.msra.mxu0 %v310
      %332 = vmatpush.bf16.msra.mxu0 %v309
      %333 = vmatmul.bf16.gmra.mxu0 %v269
      %v334 = vpop.f32.mrf.mxu0
      %v335 = vadd.f32 %v251, %v334
      %v336 = vpop.f32.mrf.mxu0
      %v337 = vadd.f32 %v251, %v336
      %338 = vmatmul.bf16.gmra.mxu0 %v270
      %v339 = vpop.f32.mrf.mxu0
      %v340 = vadd.f32 %v251, %v339
      %v341 = vpop.f32.mrf.mxu0
      %v342 = vadd.f32 %v251, %v341
      %343 = vmatmul.bf16.gmra.mxu0 %v271
      %v344 = vpop.f32.mrf.mxu0
      %v345 = vadd.f32 %v251, %v344
      %v346 = vpop.f32.mrf.mxu0
      %v347 = vadd.f32 %v251, %v346
      %348 = vmatmul.bf16.gmra.mxu0 %v272
      %v349 = vpop.f32.mrf.mxu0
      %v350 = vadd.f32 %v251, %v349
      %v351 = vpop.f32.mrf.mxu0
      %v352 = vadd.f32 %v251, %v351
      %353 = vdwg.mxu0
      %354 = vst [vmem:[%s223] sm:$0xff] %v335
      %355 = vst [vmem:[%s223 + $0x8] sm:$0xff] %v337
      %356 = vst [vmem:[%s223 + $0x10] sm:$0xff] %v340
      %357 = vst [vmem:[%s223 + $0x18] sm:$0xff] %v342
      %358 = vst [vmem:[%s223 + $0x20] sm:$0xff] %v345
      %359 = vst [vmem:[%s223 + $0x28] sm:$0xff] %v347
      %360 = vst [vmem:[%s223 + $0x30] sm:$0xff] %v350
      %361 = vst [vmem:[%s223 + $0x38] sm:$0xff] %v352
      %s362 = smul.u32 8, %s18
      %p363 = scmp.lt.s32.totalorder %s362, 15
      %s364 = scalar_select %p363, %s362, 15
      %p365 = scmp.lt.s32.totalorder %s19, 0
      %s366 = scalar_select %p365, %s19, 0
      %s367 = sadd.s32 %s366, %s364
      %s368 = smul.addr %s367, 8
      %s369 = scalar_lea.vmem %s3, %s368
      // Predicated region
      $region33: #{my_conv2d.1} parent=31 // pred_check
        %p370 = pneg %p124
      $region34: #{my_conv2d.1} parent=31 // pred_check_branch
        %372 = sbr.rel (%p370) target = $region36
      $region35: #{my_conv2d.1} parent=31 // pred_region
        %s373 = smul.u32 8, %s18
      $region36: #{my_conv2d.1} parent=31 // pred_fallthru
        _
    $region32: #{my_conv2d.1} parent=5 // pred_fallthru
      _
    %p374 = scmp.le.s32.totalorder 2, %s9
    // Predicated region
    $region37: #{my_conv2d.1} parent=5 // pred_check
      %p375 = pneg %p374
    $region38: #{my_conv2d.1} parent=5 // pred_check_branch
      %377 = sbr.rel (%p375) target = $region40
    $region39: #{my_conv2d.1} parent=5 // pred_region
      %s378 = ssub.s32 %s9, 2
      // Predicated region
      $region41: #{my_conv2d.1} parent=39 // pred_check
        %p379 = pneg %p130
      $region42: #{my_conv2d.1} parent=39 // pred_check_branch
        %381 = sbr.rel (%p379) target = $region44
      $region43: #{my_conv2d.1} parent=39 // pred_region
        %s382 = smul.u32 8, %s20
        %p383 = scmp.lt.s32.totalorder %s382, 15
        %s384 = scalar_select %p383, %s382, 15
        %p385 = scmp.lt.s32.totalorder %s21, 0
        %s386 = scalar_select %p385, %s21, 0
        %s387 = sadd.s32 %s386, %s384
        %s388 = smul.addr %s387, 8
        %s389 = scalar_lea.vmem %s3, %s388
      $region44: #{my_conv2d.1} parent=39 // pred_fallthru
        _
    $region40: #{my_conv2d.1} parent=5 // pred_fallthru
      _
  $region6: #{my_conv2d.1} parent=0 // loop_footer
    %s13 = sadd.s32 1, %s9
  $region7: #{my_conv2d.1} parent=0 // loop_footer_branch
    %8 = sbr.rel target = $region3
  $region8: #{my_conv2d.1} parent=0 // loop_exit
    _

</llo_original>
